<compile_context>
chip_gen: v5e
topology: v5e:2x2
jax: 0.10.0
libtpu: 0.0.40
codegen_flags: <defaults>
</compile_context>

<pallas_src>
import functools

import jax
import jax.numpy as jnp
import numpy as np
from jax import lax
from jax.experimental import pallas as pl
from jax.experimental.pallas import tpu as pltpu


def _cross_attn_kernel(num_heads, head_dim,
                       x_ref, ctx_ref,
                       wq_ref, bq_ref, wkv_ref, bkv_ref, wo_ref, bo_ref,
                       o_ref,
                       kv_ref, attn_ref):
    # Blocks: x_ref (1, Tq, D), ctx_ref (1, Sc, D), wq/wo (D, D) pre-transposed,
    # wkv (D, 2D) = [Wk^T | Wv^T], biases (1, D)/(1, 2D) in f32 (bq already
    # carries the 1/sqrt(head_dim) scale).
    # Scratch: kv_ref (Sc, 2D) input dtype (persists across query tiles),
    #          attn_ref (Tq, D) input dtype (per-head outputs, concatenated).
    i = pl.program_id(1)
    dtype = x_ref.dtype
    d_model = wo_ref.shape[0]

    # Compute K/V once per batch (first query tile); reuse for all later tiles.
    @pl.when(i == 0)
    def _():
        ctx = ctx_ref[0]                                           # (Sc, D)
        kv = jnp.dot(ctx, wkv_ref[...],
                     preferred_element_type=jnp.float32) + bkv_ref[...]
        kv_ref[...] = kv.astype(kv_ref.dtype)                      # (Sc, 2D)

    x = x_ref[0]                                                   # (Tq, D)
    q = jnp.dot(x, wq_ref[...],
                preferred_element_type=jnp.float32) + bq_ref[...]  # f32
    q = q.astype(dtype)        # back to input dtype for the QK^T matmul

    # Per-head attention.  Static unroll is fine for small head counts; for
    # many heads / non-128-multiple head_dim a heads-major fori_loop layout
    # would avoid relayouts (TODO(synk)).
    for h in range(num_heads):
        lo = h * head_dim
        hi = lo + head_dim
        qh = q[:, lo:hi]                                  # (Tq, hd)  dtype
        kh = kv_ref[:, lo:hi]                             # (Sc, hd)  dtype
        vh = kv_ref[:, d_model + lo:d_model + hi]         # (Sc, hd)  dtype

        # scores = q_h @ k_h^T (contract last dims, no explicit transpose).
        s = lax.dot_general(qh, kh, (((1,), (1,)), ((), ())),
                            preferred_element_type=jnp.float32)    # (Tq, Sc)

        m = jnp.max(s, axis=-1, keepdims=True)                     # (Tq, 1)
        e = jnp.exp(s - m)                                         # (Tq, Sc) f32
        denom = jnp.sum(e, axis=-1, keepdims=True)                 # (Tq, 1)

        # PV matmul in input dtype, normalize AFTER the matmul on (Tq, hd).
        pv = jnp.dot(e.astype(dtype), vh,
                     preferred_element_type=jnp.float32)           # (Tq, hd)
        head_out = pv * pl.reciprocal(denom, approx=True)          # (Tq, hd)

        attn_ref[:, lo:hi] = head_out.astype(attn_ref.dtype)

    # Single full-width output projection: (Tq, D) @ (D, D).
    out = jnp.dot(attn_ref[...], wo_ref[...],
                  preferred_element_type=jnp.float32) + bo_ref[...]
    o_ref[0] = out.astype(o_ref.dtype)


def cross_attention(x, context, params, num_heads, q_tile=256):
    """x: (B, Sx, D), context: (B, Sc, D). Returns (B, Sx, D)."""
    B, Sx, D = x.shape
    _, Sc, _ = context.shape
    head_dim = D // num_heads
    assert head_dim * num_heads == D

    wq, bq, wk, bk, wv, bv, wo, bo = params
    scale = 1.0 / float(np.sqrt(head_dim))

    # Pre-transpose weights once (outside the kernel), fold the softmax scale
    # into the query projection, and fuse Wk/Wv into one (D, 2D) weight.
    wq_t = (wq.T * scale).astype(x.dtype)
    wkv_t = jnp.concatenate([wk.T, wv.T], axis=1).astype(x.dtype)   # (D, 2D)
    wo_t = wo.T.astype(x.dtype)
    bq2 = (bq * scale).reshape(1, D).astype(jnp.float32)
    bkv2 = jnp.concatenate([bk, bv]).reshape(1, 2 * D).astype(jnp.float32)
    bo2 = bo.reshape(1, D).astype(jnp.float32)

    # Query-sequence tiling: full sequence if small, else tile.
    tq = Sx if Sx <= q_tile else q_tile
    grid = (B, pl.cdiv(Sx, tq))

    const = lambda shape: pl.BlockSpec(shape, lambda b, i: (0,) * len(shape))

    kernel = functools.partial(_cross_attn_kernel, num_heads, head_dim)

    return pl.pallas_call(
        kernel,
        out_shape=jax.ShapeDtypeStruct((B, Sx, D), x.dtype),
        grid_spec=pltpu.PrefetchScalarGridSpec(
            num_scalar_prefetch=0,
            grid=grid,
            in_specs=[
                pl.BlockSpec((1, tq, D), lambda b, i: (b, i, 0)),   # x (q-tiled)
                pl.BlockSpec((1, Sc, D), lambda b, i: (b, 0, 0)),   # context
                const((D, D)), const((1, D)),                       # Wq^T, bq
                const((D, 2 * D)), const((1, 2 * D)),               # [Wk|Wv]^T, bkv
                const((D, D)), const((1, D)),                       # Wo^T, bo
            ],
            out_specs=pl.BlockSpec((1, tq, D), lambda b, i: (b, i, 0)),
            scratch_shapes=[
                pltpu.VMEM((Sc, 2 * D), x.dtype),   # K/V, persists over q tiles
                pltpu.VMEM((tq, D), x.dtype),       # concatenated head outputs
            ]),
        compiler_params=pltpu.CompilerParams(
            # Batch stays "parallel" (megacore sharding on v7x); the q-tile
            # axis is "arbitrary" because the K/V scratch persists across it.
            dimension_semantics=("parallel", "arbitrary"),
            # Above v5e's 16 MiB default; raise further for large D / Sc.
            vmem_limit_bytes=32 * 1024 * 1024),
    )(x, context, wq_t, bq2, wkv_t, bkv2, wo_t, bo2)


def init_params(key, dim):
    """Deterministic nn.Linear-style init: U(-1/sqrt(in), 1/sqrt(in))."""
    bound = 1.0 / np.sqrt(dim)
    keys = jax.random.split(key, 8)
    params = []
    for i in range(4):
        w = jax.random.uniform(keys[2 * i], (dim, dim), jnp.float32, -bound, bound)
        b = jax.random.uniform(keys[2 * i + 1], (dim,), jnp.float32, -bound, bound)
        params += [w, b]
    return tuple(params)


def reference(x, context, params, num_heads):
    """Pure-JAX reference mirroring the PyTorch forward exactly."""
    wq, bq, wk, bk, wv, bv, wo, bo = params
    B, Sx, D = x.shape
    Sc = context.shape[1]
    hd = D // num_heads

    q = x @ wq.T + bq
    k = context @ wk.T + bk
    v = context @ wv.T + bv

    q = q.reshape(B, Sx, num_heads, hd).transpose(0, 2, 1, 3)
    k = k.reshape(B, Sc, num_heads, hd).transpose(0, 2, 1, 3)
    v = v.reshape(B, Sc, num_heads, hd).transpose(0, 2, 1, 3)

    scores = (q @ jnp.swapaxes(k, -2, -1)) / (hd ** 0.5)
    attn = jax.nn.softmax(scores, axis=-1)
    ctx_out = attn @ v
    ctx_out = ctx_out.transpose(0, 2, 1, 3).reshape(B, Sx, D)
    return ctx_out @ wo.T + bo


if __name__ == "__main__":
    batch_size = 1
    x_seq_len = 3
    context_seq_len = 5
    dim = 6
    num_heads = 2

    key = jax.random.PRNGKey(0)
    kx, kc, kp = jax.random.split(key, 3)

    x = jax.random.normal(kx, (batch_size, x_seq_len, dim), jnp.float32)
    context = jax.random.normal(kc, (batch_size, context_seq_len, dim), jnp.float32)
    params = init_params(kp, dim)

    out = cross_attention(x, context, params, num_heads)
    out = jax.block_until_ready(out)

    ref = reference(x, context, params, num_heads)
    # Slightly looser tolerance: pl.reciprocal(approx=True) on the softmax
    # denominator introduces a small (~1e-4 relative) error.
    np.testing.assert_allclose(np.asarray(out), np.asarray(ref),
                               rtol=1e-2, atol=1e-3)

    print("KERNEL_OK")
</pallas_src>

<mosaic_0001>
module attributes {stable_mosaic.version = 11 : i64} {
  func.func @_cross_attn_kernel(%arg0: i32, %arg1: i32, %arg2: memref<1x3x6xf32, #tpu.memory_space<vmem>>, %arg3: memref<1x5x6xf32, #tpu.memory_space<vmem>>, %arg4: memref<6x6xf32, #tpu.memory_space<vmem>>, %arg5: memref<1x6xf32, #tpu.memory_space<vmem>>, %arg6: memref<6x12xf32, #tpu.memory_space<vmem>>, %arg7: memref<1x12xf32, #tpu.memory_space<vmem>>, %arg8: memref<6x6xf32, #tpu.memory_space<vmem>>, %arg9: memref<1x6xf32, #tpu.memory_space<vmem>>, %arg10: memref<1x3x6xf32, #tpu.memory_space<vmem>>, %arg11: memref<5x12xf32, #tpu.memory_space<vmem>>, %arg12: memref<3x6xf32, #tpu.memory_space<vmem>>) attributes {dimension_semantics = [#tpu.dimension_semantics<parallel>, #tpu.dimension_semantics<arbitrary>], iteration_bounds = array<i64: 1, 1>, scalar_prefetch = 0 : i64, scratch_operands = 2 : i64, tpu.core_type = #tpu.core_type<tc>, window_params = [{transform_indices = @transform_0, window_bounds = array<i64: 1, 3, 6>}, {transform_indices = @transform_1, window_bounds = array<i64: 1, 5, 6>}, {pipeline_mode = #tpu.pipeline_mode<synchronous>, transform_indices = @transform_2, window_bounds = array<i64: 6, 6>}, {pipeline_mode = #tpu.pipeline_mode<synchronous>, transform_indices = @transform_3, window_bounds = array<i64: 1, 6>}, {pipeline_mode = #tpu.pipeline_mode<synchronous>, transform_indices = @transform_4, window_bounds = array<i64: 6, 12>}, {pipeline_mode = #tpu.pipeline_mode<synchronous>, transform_indices = @transform_5, window_bounds = array<i64: 1, 12>}, {pipeline_mode = #tpu.pipeline_mode<synchronous>, transform_indices = @transform_6, window_bounds = array<i64: 6, 6>}, {pipeline_mode = #tpu.pipeline_mode<synchronous>, transform_indices = @transform_7, window_bounds = array<i64: 1, 6>}, {transform_indices = @transform_8, window_bounds = array<i64: 1, 3, 6>}]} {
    %c0_i32 = arith.constant 0 : i32
    %0 = arith.cmpi eq, %arg1, %c0_i32 : i32
    %1 = arith.extui %0 : i1 to i32
    %c0_i32_0 = arith.constant 0 : i32
    %2 = arith.cmpi ne, %1, %c0_i32_0 : i32
    scf.if %2 {
      %c0_34 = arith.constant 0 : index
      %c0_35 = arith.constant 0 : index
      %c0_36 = arith.constant 0 : index
      %51 = vector.load %arg3[%c0_34, %c0_35, %c0_36] : memref<1x5x6xf32, #tpu.memory_space<vmem>>, vector<1x5x6xf32>
      %52 = vector.shape_cast %51 : vector<1x5x6xf32> to vector<5x6xf32>
      %c0_37 = arith.constant 0 : index
      %c0_38 = arith.constant 0 : index
      %53 = vector.load %arg6[%c0_37, %c0_38] : memref<6x12xf32, #tpu.memory_space<vmem>>, vector<6x12xf32>
      %cst_39 = arith.constant dense<0.000000e+00> : vector<5x12xf32>
      %54 = tpu.matmul %52, %53, %cst_39 {dimension_numbers = #tpu.dot_dimension_numbers<[1], [0], [0], [1], [0, 0, 1, 1], [], []>} : vector<5x6xf32>, vector<6x12xf32>, vector<5x12xf32> -> vector<5x12xf32>
      %c0_40 = arith.constant 0 : index
      %c0_41 = arith.constant 0 : index
      %55 = vector.load %arg7[%c0_40, %c0_41] : memref<1x12xf32, #tpu.memory_space<vmem>>, vector<1x12xf32>
      %56 = vector.broadcast %55 : vector<1x12xf32> to vector<5x12xf32>
      %57 = arith.addf %54, %56 : vector<5x12xf32>
      %c0_42 = arith.constant 0 : index
      %c0_43 = arith.constant 0 : index
      %58 = vector.load %arg11[%c0_42, %c0_43] : memref<5x12xf32, #tpu.memory_space<vmem>>, vector<5x12xf32>
      tpu.vector_store %arg11[%c0_42, %c0_43], %57 {strides = array<i32>} : memref<5x12xf32, #tpu.memory_space<vmem>>, vector<5x12xf32>,
    } else {
    }
    %c0 = arith.constant 0 : index
    %c0_1 = arith.constant 0 : index
    %c0_2 = arith.constant 0 : index
    %3 = vector.load %arg2[%c0, %c0_1, %c0_2] : memref<1x3x6xf32, #tpu.memory_space<vmem>>, vector<1x3x6xf32>
    %4 = vector.shape_cast %3 : vector<1x3x6xf32> to vector<3x6xf32>
    %c0_3 = arith.constant 0 : index
    %c0_4 = arith.constant 0 : index
    %5 = vector.load %arg4[%c0_3, %c0_4] : memref<6x6xf32, #tpu.memory_space<vmem>>, vector<6x6xf32>
    %cst = arith.constant dense<0.000000e+00> : vector<3x6xf32>
    %6 = tpu.matmul %4, %5, %cst {dimension_numbers = #tpu.dot_dimension_numbers<[1], [0], [0], [1], [0, 0, 1, 1], [], []>} : vector<3x6xf32>, vector<6x6xf32>, vector<3x6xf32> -> vector<3x6xf32>
    %c0_5 = arith.constant 0 : index
    %c0_6 = arith.constant 0 : index
    %7 = vector.load %arg5[%c0_5, %c0_6] : memref<1x6xf32, #tpu.memory_space<vmem>>, vector<1x6xf32>
    %8 = vector.broadcast %7 : vector<1x6xf32> to vector<3x6xf32>
    %9 = arith.addf %6, %8 : vector<3x6xf32>
    %10 = vector.extract_strided_slice %9 {offsets = [0, 0], sizes = [3, 3], strides = [1, 1]} : vector<3x6xf32> to vector<3x3xf32>
    %c0_7 = arith.constant 0 : index
    %c0_8 = arith.constant 0 : index
    %11 = vector.load %arg11[%c0_7, %c0_8] : memref<5x12xf32, #tpu.memory_space<vmem>>, vector<5x3xf32>
    %c0_9 = arith.constant 0 : index
    %c6 = arith.constant 6 : index
    %12 = vector.load %arg11[%c0_9, %c6] : memref<5x12xf32, #tpu.memory_space<vmem>>, vector<5x3xf32>
    %cst_10 = arith.constant dense<0.000000e+00> : vector<3x5xf32>
    %13 = tpu.matmul %10, %11, %cst_10 {dimension_numbers = #tpu.dot_dimension_numbers<[1], [1], [0], [0], [0, 0, 1, 0], [], []>} : vector<3x3xf32>, vector<5x3xf32>, vector<3x5xf32> -> vector<3x5xf32>
    %cst_11 = arith.constant dense<0xFF800000> : vector<3xf32>
    %14 = vector.multi_reduction <maximumf>, %13, %cst_11 [1] : vector<3x5xf32> to vector<3xf32>
    %15 = vector.shape_cast %14 : vector<3xf32> to vector<3x1xf32>
    %16 = vector.broadcast %15 : vector<3x1xf32> to vector<3x5xf32>
    %17 = arith.subf %13, %16 : vector<3x5xf32>
    %18 = math.exp %17 : vector<3x5xf32>
    %cst_12 = arith.constant dense<0.000000e+00> : vector<3xf32>
    %19 = vector.multi_reduction <add>, %18, %cst_12 [1] : vector<3x5xf32> to vector<3xf32>
    %20 = vector.shape_cast %19 : vector<3xf32> to vector<3x1xf32>
    %cst_13 = arith.constant dense<0.000000e+00> : vector<3x3xf32>
    %21 = tpu.matmul %18, %12, %cst_13 {dimension_numbers = #tpu.dot_dimension_numbers<[1], [0], [0], [1], [0, 0, 1, 1], [], []>} : vector<3x5xf32>, vector<5x3xf32>, vector<3x3xf32> -> vector<3x3xf32>
    %22 = tpu.reciprocal %20 {approx = true} : vector<3x1xf32> -> vector<3x1xf32>
    %23 = vector.broadcast %22 : vector<3x1xf32> to vector<3x3xf32>
    %24 = arith.mulf %21, %23 : vector<3x3xf32>
    %c0_14 = arith.constant 0 : index
    %c0_15 = arith.constant 0 : index
    %25 = vector.load %arg12[%c0_14, %c0_15] : memref<3x6xf32, #tpu.memory_space<vmem>>, vector<3x3xf32>
    tpu.vector_store %arg12[%c0_14, %c0_15], %24 {strides = array<i32>} : memref<3x6xf32, #tpu.memory_space<vmem>>, vector<3x3xf32>,
    %26 = vector.extract_strided_slice %9 {offsets = [0, 3], sizes = [3, 3], strides = [1, 1]} : vector<3x6xf32> to vector<3x3xf32>
    %c0_16 = arith.constant 0 : index
    %c3 = arith.constant 3 : index
    %27 = vector.load %arg11[%c0_16, %c3] : memref<5x12xf32, #tpu.memory_space<vmem>>, vector<5x3xf32>
    %c0_17 = arith.constant 0 : index
    %c9 = arith.constant 9 : index
    %28 = vector.load %arg11[%c0_17, %c9] : memref<5x12xf32, #tpu.memory_space<vmem>>, vector<5x3xf32>
    %cst_18 = arith.constant dense<0.000000e+00> : vector<3x5xf32>
    %29 = tpu.matmul %26, %27, %cst_18 {dimension_numbers = #tpu.dot_dimension_numbers<[1], [1], [0], [0], [0, 0, 1, 0], [], []>} : vector<3x3xf32>, vector<5x3xf32>, vector<3x5xf32> -> vector<3x5xf32>
    %cst_19 = arith.constant dense<0xFF800000> : vector<3xf32>
    %30 = vector.multi_reduction <maximumf>, %29, %cst_19 [1] : vector<3x5xf32> to vector<3xf32>
    %31 = vector.shape_cast %30 : vector<3xf32> to vector<3x1xf32>
    %32 = vector.broadcast %31 : vector<3x1xf32> to vector<3x5xf32>
    %33 = arith.subf %29, %32 : vector<3x5xf32>
    %34 = math.exp %33 : vector<3x5xf32>
    %cst_20 = arith.constant dense<0.000000e+00> : vector<3xf32>
    %35 = vector.multi_reduction <add>, %34, %cst_20 [1] : vector<3x5xf32> to vector<3xf32>
    %36 = vector.shape_cast %35 : vector<3xf32> to vector<3x1xf32>
    %cst_21 = arith.constant dense<0.000000e+00> : vector<3x3xf32>
    %37 = tpu.matmul %34, %28, %cst_21 {dimension_numbers = #tpu.dot_dimension_numbers<[1], [0], [0], [1], [0, 0, 1, 1], [], []>} : vector<3x5xf32>, vector<5x3xf32>, vector<3x3xf32> -> vector<3x3xf32>
    %38 = tpu.reciprocal %36 {approx = true} : vector<3x1xf32> -> vector<3x1xf32>
    %39 = vector.broadcast %38 : vector<3x1xf32> to vector<3x3xf32>
    %40 = arith.mulf %37, %39 : vector<3x3xf32>
    %c0_22 = arith.constant 0 : index
    %c3_23 = arith.constant 3 : index
    %41 = vector.load %arg12[%c0_22, %c3_23] : memref<3x6xf32, #tpu.memory_space<vmem>>, vector<3x3xf32>
    tpu.vector_store %arg12[%c0_22, %c3_23], %40 {strides = array<i32>} : memref<3x6xf32, #tpu.memory_space<vmem>>, vector<3x3xf32>,
    %c0_24 = arith.constant 0 : index
    %c0_25 = arith.constant 0 : index
    %42 = vector.load %arg12[%c0_24, %c0_25] : memref<3x6xf32, #tpu.memory_space<vmem>>, vector<3x6xf32>
    %c0_26 = arith.constant 0 : index
    %c0_27 = arith.constant 0 : index
    %43 = vector.load %arg8[%c0_26, %c0_27] : memref<6x6xf32, #tpu.memory_space<vmem>>, vector<6x6xf32>
    %cst_28 = arith.constant dense<0.000000e+00> : vector<3x6xf32>
    %44 = tpu.matmul %42, %43, %cst_28 {dimension_numbers = #tpu.dot_dimension_numbers<[1], [0], [0], [1], [0, 0, 1, 1], [], []>} : vector<3x6xf32>, vector<6x6xf32>, vector<3x6xf32> -> vector<3x6xf32>
    %c0_29 = arith.constant 0 : index
    %c0_30 = arith.constant 0 : index
    %45 = vector.load %arg9[%c0_29, %c0_30] : memref<1x6xf32, #tpu.memory_space<vmem>>, vector<1x6xf32>
    %46 = vector.broadcast %45 : vector<1x6xf32> to vector<3x6xf32>
    %47 = arith.addf %44, %46 : vector<3x6xf32>
    %c0_31 = arith.constant 0 : index
    %c0_32 = arith.constant 0 : index
    %c0_33 = arith.constant 0 : index
    %48 = vector.load %arg10[%c0_31, %c0_32, %c0_33] : memref<1x3x6xf32, #tpu.memory_space<vmem>>, vector<1x3x6xf32>
    %49 = vector.shape_cast %48 : vector<1x3x6xf32> to vector<3x6xf32>
    %50 = vector.shape_cast %47 : vector<3x6xf32> to vector<1x3x6xf32>
    tpu.vector_store %arg10[%c0_31, %c0_32, %c0_33], %50 {strides = array<i32>} : memref<1x3x6xf32, #tpu.memory_space<vmem>>, vector<1x3x6xf32>,
    return
  }
  func.func @transform_0(%arg0: i32, %arg1: i32) -> (i32, i32, i32) {
    %c0_i32 = arith.constant 0 : i32
    %c0_i32_0 = arith.constant 0 : i32
    return %arg0, %arg1, %c0_i32 : i32, i32, i32
  }
  func.func @transform_1(%arg0: i32, %arg1: i32) -> (i32, i32, i32) {
    %c0_i32 = arith.constant 0 : i32
    %c0_i32_0 = arith.constant 0 : i32
    %c0_i32_1 = arith.constant 0 : i32
    return %arg0, %c0_i32, %c0_i32_0 : i32, i32, i32
  }
  func.func @transform_2(%arg0: i32, %arg1: i32) -> (i32, i32) {
    %c0_i32 = arith.constant 0 : i32
    %c0_i32_0 = arith.constant 0 : i32
    %c0_i32_1 = arith.constant 0 : i32
    return %c0_i32, %c0_i32_0 : i32, i32
  }
  func.func @transform_3(%arg0: i32, %arg1: i32) -> (i32, i32) {
    %c0_i32 = arith.constant 0 : i32
    %c0_i32_0 = arith.constant 0 : i32
    %c0_i32_1 = arith.constant 0 : i32
    return %c0_i32, %c0_i32_0 : i32, i32
  }
  func.func @transform_4(%arg0: i32, %arg1: i32) -> (i32, i32) {
    %c0_i32 = arith.constant 0 : i32
    %c0_i32_0 = arith.constant 0 : i32
    %c0_i32_1 = arith.constant 0 : i32
    return %c0_i32, %c0_i32_0 : i32, i32
  }
  func.func @transform_5(%arg0: i32, %arg1: i32) -> (i32, i32) {
    %c0_i32 = arith.constant 0 : i32
    %c0_i32_0 = arith.constant 0 : i32
    %c0_i32_1 = arith.constant 0 : i32
    return %c0_i32, %c0_i32_0 : i32, i32
  }
  func.func @transform_6(%arg0: i32, %arg1: i32) -> (i32, i32) {
    %c0_i32 = arith.constant 0 : i32
    %c0_i32_0 = arith.constant 0 : i32
    %c0_i32_1 = arith.constant 0 : i32
    return %c0_i32, %c0_i32_0 : i32, i32
  }
  func.func @transform_7(%arg0: i32, %arg1: i32) -> (i32, i32) {
    %c0_i32 = arith.constant 0 : i32
    %c0_i32_0 = arith.constant 0 : i32
    %c0_i32_1 = arith.constant 0 : i32
    return %c0_i32, %c0_i32_0 : i32, i32
  }
  func.func @transform_8(%arg0: i32, %arg1: i32) -> (i32, i32, i32) {
    %c0_i32 = arith.constant 0 : i32
    %c0_i32_0 = arith.constant 0 : i32
    return %arg0, %arg1, %c0_i32 : i32, i32, i32
  }
}

</mosaic_0001>

<llo_original>
// kernel: tpu_custom_call.1
$region0: #{tpu_custom_call.1}
  #allocation0 [shape = 'u32[]', space=smem, size = 0x4, offset = 0x4, fixed_abs, tag = 'smem constant byte address 0x4 - core index']
  #allocation1 [shape = 'u32[72,128]{1,0:T(1,128)}', space=vmem, size = 0x9000, scoped, tag = 'internal scratch']
  #allocation2 [shape = 'f32[5,12]{1,0:T(8,128)}', space=vmem, size = 0x1000, scoped, tag = 'scratch operand']
  #allocation3 [shape = 'f32[3,6]{1,0:T(4,128)}', space=vmem, size = 0x800, scoped, tag = 'scratch operand']
  %s0 = inlined_call_operand.vmem [shape: f32[1,3,6], index: 0, kind: input, shape index: {}]
  %s1 = inlined_call_operand.vmem [shape: f32[1,5,6], index: 1, kind: input, shape index: {}]
  %s2 = inlined_call_operand.vmem [shape: f32[6,6], index: 2, kind: input, shape index: {}]
  %s3 = inlined_call_operand.vmem [shape: f32[1,6], index: 3, kind: input, shape index: {}]
  %s4 = inlined_call_operand.hbm [shape: f32[6,12], index: 4, kind: input, shape index: {}]
  %s5 = inlined_call_operand.vmem [shape: f32[1,12], index: 5, kind: input, shape index: {}]
  %s6 = inlined_call_operand.hbm [shape: f32[6,6], index: 6, kind: input, shape index: {}]
  %s7 = inlined_call_operand.vmem [shape: f32[1,6], index: 7, kind: input, shape index: {}]
  %s8 = inlined_call_operand.vmem [shape: f32[1,3,6], index: 8, kind: output, shape index: {}]
  %s9 = sld [smem:[#allocation0]]
  $region54: #{tpu_custom_call.1} parent=0
    _
  %s11 = ssub.s32 1, %s9
  %s12 = scalar_select 0, %s11, %s9
  $region1: #{tpu_custom_call.1} parent=0
    #allocation4 [shape = 'u8[4096]{0}', space=vmem, size = 0x1000, scoped, tag = 'input window, operand 4, single buffered']
    #allocation5 [shape = 's32[1]{0}', space=sflag, size = 0x4, scoped, tag = 'scoped memory for tpu_custom_call.1']
    #allocation6 [shape = 'u8[4096]{0}', space=vmem, size = 0x1000, scoped, tag = 'input window, operand 6, single buffered']
    #allocation7 [shape = 's32[1]{0}', space=sflag, size = 0x4, scoped, tag = 'scoped memory for tpu_custom_call.1']
    %13 = vsyncpa [#allocation5], 0
    %14 = vsyncpa [#allocation7], 0
    // Predicated region
    $region2: #{tpu_custom_call.1} parent=1 // pred_check
      _
    $region3: #{tpu_custom_call.1} parent=1 // pred_check_branch
      %16 = sbr.rel (0) target = $region5
    $region4: #{tpu_custom_call.1} parent=1 // pred_region
      _
    $region5: #{tpu_custom_call.1} parent=1 // pred_fallthru
      _
    // Predicated region
    $region6: #{tpu_custom_call.1} parent=1 // pred_check
      _
    $region7: #{tpu_custom_call.1} parent=1 // pred_check_branch
      %18 = sbr.rel (0) target = $region9
    $region8: #{tpu_custom_call.1} parent=1 // pred_region
      _
    $region9: #{tpu_custom_call.1} parent=1 // pred_fallthru
      _
    // Predicated region
    $region10: #{tpu_custom_call.1} parent=1 // pred_check
      _
    $region11: #{tpu_custom_call.1} parent=1 // pred_check_branch
      %20 = sbr.rel (0) target = $region13
    $region12: #{tpu_custom_call.1} parent=1 // pred_region
      _
    $region13: #{tpu_custom_call.1} parent=1 // pred_fallthru
      _
    // Predicated region
    $region14: #{tpu_custom_call.1} parent=1 // pred_check
      _
    $region15: #{tpu_custom_call.1} parent=1 // pred_check_branch
      %22 = sbr.rel (0) target = $region17
    $region16: #{tpu_custom_call.1} parent=1 // pred_region
      _
    $region17: #{tpu_custom_call.1} parent=1 // pred_fallthru
      _
    // Predicated region
    $region18: #{tpu_custom_call.1} parent=1 // pred_check
      _
    $region19: #{tpu_custom_call.1} parent=1 // pred_check_branch
      %24 = sbr.rel (0) target = $region21
    $region20: #{tpu_custom_call.1} parent=1 // pred_region
      %26 = vsyncadd [#allocation5], 0
      %s28 = sshll.u32 %s4, 4
      %s29 = int_to_ptr.hbm [resolvable:$true] %s28
      %s30 = sshll.u32 [#allocation4], 4
      %s31 = int_to_ptr.vmem [resolvable:$true] %s30
      %33 = dma.hbm_to_vmem [thread:$0]  %s29, 128, %s31, [#allocation5]
    $region21: #{tpu_custom_call.1} parent=1 // pred_fallthru
      _
    // Predicated region
    $region22: #{tpu_custom_call.1} parent=1 // pred_check
      _
    $region23: #{tpu_custom_call.1} parent=1 // pred_check_branch
      %35 = sbr.rel (0) target = $region25
    $region24: #{tpu_custom_call.1} parent=1 // pred_region
      _
    $region25: #{tpu_custom_call.1} parent=1 // pred_fallthru
      _
    // Predicated region
    $region26: #{tpu_custom_call.1} parent=1 // pred_check
      _
    $region27: #{tpu_custom_call.1} parent=1 // pred_check_branch
      %37 = sbr.rel (0) target = $region29
    $region28: #{tpu_custom_call.1} parent=1 // pred_region
      %39 = vsyncadd [#allocation7], 0
      %s41 = sshll.u32 %s6, 4
      %s42 = int_to_ptr.hbm [resolvable:$true] %s41
      %s43 = sshll.u32 [#allocation6], 4
      %s44 = int_to_ptr.vmem [resolvable:$true] %s43
      %46 = dma.hbm_to_vmem [thread:$0]  %s42, 128, %s44, [#allocation7]
    $region29: #{tpu_custom_call.1} parent=1 // pred_fallthru
      _
    // Predicated region
    $region30: #{tpu_custom_call.1} parent=1 // pred_check
      _
    $region31: #{tpu_custom_call.1} parent=1 // pred_check_branch
      %48 = sbr.rel (0) target = $region33
    $region32: #{tpu_custom_call.1} parent=1 // pred_region
      _
    $region33: #{tpu_custom_call.1} parent=1 // pred_fallthru
      _
    // Predicated region
    $region34: #{tpu_custom_call.1} parent=1 // pred_check
      _
    $region35: #{tpu_custom_call.1} parent=1 // pred_check_branch
      %50 = sbr.rel (0) target = $region37
    $region36: #{tpu_custom_call.1} parent=1 // pred_region
      %52 = dma.done [#allocation5], 128
    $region37: #{tpu_custom_call.1} parent=1 // pred_fallthru
      _
    // Predicated region
    $region38: #{tpu_custom_call.1} parent=1 // pred_check
      _
    $region39: #{tpu_custom_call.1} parent=1 // pred_check_branch
      %54 = sbr.rel (0) target = $region41
    $region40: #{tpu_custom_call.1} parent=1 // pred_region
      %56 = dma.done [#allocation7], 128
    $region41: #{tpu_custom_call.1} parent=1 // pred_fallthru
      _
    %p57 = scmp.eq.s32.totalorder 0, 0
    // Predicated region
    $region42: #{tpu_custom_call.1} parent=1 // pred_check
      %p58 = pneg %p57
    $region43: #{tpu_custom_call.1} parent=1 // pred_check_branch
      %60 = sbr.rel (%p58) target = $region45
    $region44: #{tpu_custom_call.1} parent=1 // pred_region
      %v61 = vld [vmem:[%s1] sm:$0x1f]
      %v62 = vld [vmem:[#allocation4] sm:$0x3f]
      %v63 = vld [vmem:[%s5] sm:$0x1]
      %v65 = vperm.slane %v63, 0
      %vm67 = vcmask 48128
      %v69 = vsel %vm67, %v61, 0
      %vm71 = vcmask 1045504
      %v73 = vsel %vm71, %v62, 0
      %75 = vmatpush.msra.mxu0 0.0
      %76 = vmatpush.msra.mxu0 0.0
      %77 = vmatpush.msra.mxu0 0.0
      %78 = vmatpush.msra.mxu0 0.0
      %79 = vmatpush.msra.mxu0 0.0
      %80 = vmatpush.msra.mxu0 0.0
      %81 = vmatpush.msra.mxu0 0.0
      %82 = vmatpush.msra.mxu0 0.0
      %83 = vmatpush.msra.mxu0 0.0
      %84 = vmatpush.msra.mxu0 0.0
      %85 = vmatpush.msra.mxu0 0.0
      %86 = vmatpush.msra.mxu0 0.0
      %87 = vmatpush.msra.mxu0 0.0
      %88 = vmatpush.msra.mxu0 0.0
      %89 = vmatpush.msra.mxu0 0.0
      %90 = vmatpush.msra.mxu0 %v73
      %91 = vmatmul.f32.gmra.mxu0 %v69
      %v92 = vpop.f32.mrf.mxu0
      %v93 = vadd.f32 %v65, %v92
      %94 = vdwg.mxu0
      %vm95 = vcmask 94208
      %96 = vst.msk [vmem:[#allocation2] sm:$0x1f] %vm95, %v93
    $region45: #{tpu_custom_call.1} parent=1 // pred_fallthru
      _
    %v97 = vld [vmem:[%s0] sm:$0x7]
    %v98 = vld [vmem:[%s2] sm:$0x3f]
    %v99 = vld [vmem:[%s3] sm:$0x1]
    %v101 = vperm.slane %v99, 0
    %vm103 = vcmask 48128
    %v105 = vsel %vm103, %v97, 0
    %vm107 = vcmask 1045504
    %v109 = vsel %vm107, %v98, 0
    %111 = vmatpush.msra.mxu0 0.0
    %112 = vmatpush.msra.mxu0 0.0
    %113 = vmatpush.msra.mxu0 0.0
    %114 = vmatpush.msra.mxu0 0.0
    %115 = vmatpush.msra.mxu0 0.0
    %116 = vmatpush.msra.mxu0 0.0
    %117 = vmatpush.msra.mxu0 0.0
    %118 = vmatpush.msra.mxu0 0.0
    %119 = vmatpush.msra.mxu0 0.0
    %120 = vmatpush.msra.mxu0 0.0
    %121 = vmatpush.msra.mxu0 0.0
    %122 = vmatpush.msra.mxu0 0.0
    %123 = vmatpush.msra.mxu0 0.0
    %124 = vmatpush.msra.mxu0 0.0
    %125 = vmatpush.msra.mxu0 0.0
    %126 = vmatpush.msra.mxu0 %v109
    %127 = vmatmul.f32.gmra.mxu0 %v105
    %v128 = vpop.f32.mrf.mxu0
    %v129 = vadd.f32 %v101, %v128
    %130 = vdwg.mxu0
    %v131 = vld [vmem:[#allocation2] sm:$0x1f]
    %vm132 = vcmask 23552
    %v134 = vsel %vm132, %v129, 0
    %v137 = vsel %vm132, %v131, 0
    %139 = vmatpush.xpose.msra.mxu0 0.0
    %140 = vmatpush.xpose.msra.mxu0 0.0
    %141 = vmatpush.xpose.msra.mxu0 0.0
    %142 = vmatpush.xpose.msra.mxu0 0.0
    %143 = vmatpush.xpose.msra.mxu0 0.0
    %144 = vmatpush.xpose.msra.mxu0 0.0
    %145 = vmatpush.xpose.msra.mxu0 0.0
    %146 = vmatpush.xpose.msra.mxu0 0.0
    %147 = vmatpush.xpose.msra.mxu0 0.0
    %148 = vmatpush.xpose.msra.mxu0 0.0
    %149 = vmatpush.xpose.msra.mxu0 0.0
    %150 = vmatpush.xpose.msra.mxu0 0.0
    %151 = vmatpush.xpose.msra.mxu0 0.0
    %152 = vmatpush.xpose.msra.mxu0 0.0
    %153 = vmatpush.xpose.msra.mxu0 0.0
    %154 = vmatpush.xpose.msra.mxu0 %v137
    %155 = vmatmul.f32.gmra.mxu0 %v134
    %v156 = vpop.f32.mrf.mxu0
    %v157 = vadd.f32 0.0, %v156
    %158 = vdwg.mxu0
    %vm159 = vcmask 34816
    %v160 = vsel %vm159, %v157, -inf
    %161 = vmax.xlane.f32.xlu0 %v160
    %v162 = vpop.xlane.xlu0 %161
    %v163 = vsub.f32 %v157, %v162
    %v164 = vmul.f32 %v163, 1.442695
    %v165 = vpow.pop %v164
    %v166 = vsel %vm159, %v165, 0.0
    %167 = vadd.xlane.f32.xlu0 %v166
    %v168 = vpop.xlane.xlu0 %167
    %169 = vrot.lane.b32.xlu0 %v131, 122
    %v170 = vpop.permute.xlu0 %169
    %vm171 = vcmask 39936
    %v173 = vsel %vm171, %v165, 0
    %vm175 = vcmask 1044480
    %v176 = vsel %vm175, %v170, 0
    %178 = vmatpush.msra.mxu0 0.0
    %179 = vmatpush.msra.mxu0 0.0
    %180 = vmatpush.msra.mxu0 0.0
    %181 = vmatpush.msra.mxu0 0.0
    %182 = vmatpush.msra.mxu0 0.0
    %183 = vmatpush.msra.mxu0 0.0
    %184 = vmatpush.msra.mxu0 0.0
    %185 = vmatpush.msra.mxu0 0.0
    %186 = vmatpush.msra.mxu0 0.0
    %187 = vmatpush.msra.mxu0 0.0
    %188 = vmatpush.msra.mxu0 0.0
    %189 = vmatpush.msra.mxu0 0.0
    %190 = vmatpush.msra.mxu0 0.0
    %191 = vmatpush.msra.mxu0 0.0
    %192 = vmatpush.msra.mxu0 0.0
    %193 = vmatpush.msra.mxu0 %v176
    %194 = vmatmul.f32.gmra.mxu0 %v173
    %v195 = vpop.f32.mrf.mxu0
    %v196 = vadd.f32 0.0, %v195
    %197 = vdwg.mxu0
    %v198 = vrcp.pop %v168
    %v199 = vmul.f32 %v196, %v198
    %vm200 = vcmask 18432
    %201 = vst.msk [vmem:[#allocation3] sm:$0x7] %vm200, %v199
    %v202 = vld [vmem:[#allocation2] sm:$0x1f]
    %203 = vrot.lane.b32.xlu0 %v129, 125
    %v204 = vpop.permute.xlu0 %203
    %206 = vrot.lane.b32.xlu0 %v202, 125
    %v207 = vpop.permute.xlu0 %206
    %v208 = vsel %vm132, %v204, 0
    %v210 = vsel %vm132, %v207, 0
    %212 = vmatpush.xpose.msra.mxu0 0.0
    %213 = vmatpush.xpose.msra.mxu0 0.0
    %214 = vmatpush.xpose.msra.mxu0 0.0
    %215 = vmatpush.xpose.msra.mxu0 0.0
    %216 = vmatpush.xpose.msra.mxu0 0.0
    %217 = vmatpush.xpose.msra.mxu0 0.0
    %218 = vmatpush.xpose.msra.mxu0 0.0
    %219 = vmatpush.xpose.msra.mxu0 0.0
    %220 = vmatpush.xpose.msra.mxu0 0.0
    %221 = vmatpush.xpose.msra.mxu0 0.0
    %222 = vmatpush.xpose.msra.mxu0 0.0
    %223 = vmatpush.xpose.msra.mxu0 0.0
    %224 = vmatpush.xpose.msra.mxu0 0.0
    %225 = vmatpush.xpose.msra.mxu0 0.0
    %226 = vmatpush.xpose.msra.mxu0 0.0
    %227 = vmatpush.xpose.msra.mxu0 %v210
    %228 = vmatmul.f32.gmra.mxu0 %v208
    %v229 = vpop.f32.mrf.mxu0
    %v230 = vadd.f32 0.0, %v229
    %231 = vdwg.mxu0
    %v232 = vsel %vm159, %v230, -inf
    %233 = vmax.xlane.f32.xlu0 %v232
    %v234 = vpop.xlane.xlu0 %233
    %v235 = vsub.f32 %v230, %v234
    %v236 = vmul.f32 %v235, 1.442695
    %v237 = vpow.pop %v236
    %v238 = vsel %vm159, %v237, 0.0
    %239 = vadd.xlane.f32.xlu0 %v238
    %v240 = vpop.xlane.xlu0 %239
    %241 = vrot.lane.b32.xlu0 %v202, 119
    %v242 = vpop.permute.xlu0 %241
    %v244 = vsel %vm171, %v237, 0
    %v246 = vsel %vm175, %v242, 0
    %248 = vmatpush.msra.mxu0 0.0
    %249 = vmatpush.msra.mxu0 0.0
    %250 = vmatpush.msra.mxu0 0.0
    %251 = vmatpush.msra.mxu0 0.0
    %252 = vmatpush.msra.mxu0 0.0
    %253 = vmatpush.msra.mxu0 0.0
    %254 = vmatpush.msra.mxu0 0.0
    %255 = vmatpush.msra.mxu0 0.0
    %256 = vmatpush.msra.mxu0 0.0
    %257 = vmatpush.msra.mxu0 0.0
    %258 = vmatpush.msra.mxu0 0.0
    %259 = vmatpush.msra.mxu0 0.0
    %260 = vmatpush.msra.mxu0 0.0
    %261 = vmatpush.msra.mxu0 0.0
    %262 = vmatpush.msra.mxu0 0.0
    %263 = vmatpush.msra.mxu0 %v246
    %264 = vmatmul.f32.gmra.mxu0 %v244
    %v265 = vpop.f32.mrf.mxu0
    %v266 = vadd.f32 0.0, %v265
    %267 = vdwg.mxu0
    %v268 = vrcp.pop %v240
    %v269 = vmul.f32 %v266, %v268
    %271 = vrot.lane.b32.xlu0 %v269, 3
    %v272 = vpop.permute.xlu0 %271
    %vm274 = vcmask 43032
    %275 = vst.msk [vmem:[#allocation3] sm:$0x7] %vm274, %v272
    %v276 = vld [vmem:[#allocation3] sm:$0x7]
    %v277 = vld [vmem:[#allocation6] sm:$0x3f]
    %v278 = vld [vmem:[%s7] sm:$0x1]
    %v280 = vperm.slane %v278, 0
    %v283 = vsel %vm103, %v276, 0
    %v286 = vsel %vm107, %v277, 0
    %288 = vmatpush.msra.mxu0 0.0
    %289 = vmatpush.msra.mxu0 0.0
    %290 = vmatpush.msra.mxu0 0.0
    %291 = vmatpush.msra.mxu0 0.0
    %292 = vmatpush.msra.mxu0 0.0
    %293 = vmatpush.msra.mxu0 0.0
    %294 = vmatpush.msra.mxu0 0.0
    %295 = vmatpush.msra.mxu0 0.0
    %296 = vmatpush.msra.mxu0 0.0
    %297 = vmatpush.msra.mxu0 0.0
    %298 = vmatpush.msra.mxu0 0.0
    %299 = vmatpush.msra.mxu0 0.0
    %300 = vmatpush.msra.mxu0 0.0
    %301 = vmatpush.msra.mxu0 0.0
    %302 = vmatpush.msra.mxu0 0.0
    %303 = vmatpush.msra.mxu0 %v286
    %304 = vmatmul.f32.gmra.mxu0 %v283
    %v305 = vpop.f32.mrf.mxu0
    %v306 = vadd.f32 %v280, %v305
    %307 = vdwg.mxu0
    %vm308 = vcmask 43008
    %309 = vst.msk [vmem:[%s8] sm:$0x7] %vm308, %v306
    // Predicated region
    $region46: #{tpu_custom_call.1} parent=1 // pred_check
      _
    $region47: #{tpu_custom_call.1} parent=1 // pred_check_branch
      %311 = sbr.rel (0) target = $region49
    $region48: #{tpu_custom_call.1} parent=1 // pred_region
      _
    $region49: #{tpu_custom_call.1} parent=1 // pred_fallthru
      _
    // Predicated region
    $region50: #{tpu_custom_call.1} parent=1 // pred_check
      _
    $region51: #{tpu_custom_call.1} parent=1 // pred_check_branch
      %313 = sbr.rel (0) target = $region53
    $region52: #{tpu_custom_call.1} parent=1 // pred_region
      _
    $region53: #{tpu_custom_call.1} parent=1 // pred_fallthru
      _
    %314 = vsyncpa [#allocation5], 1
    %315 = vsyncpa [#allocation7], 1

</llo_original>
